<compile_context>
chip_gen: v7x
topology: tpu7x:2x2x1
jax: 0.10.0
libtpu: 0.0.40
codegen_flags: <defaults>
</compile_context>

<pallas_src>
import functools

import jax
import jax.numpy as jnp
from jax import lax
from jax.experimental import pallas as pl
from jax.experimental.pallas import tpu as pltpu

_LANE = 128
_SUBLANE = 8
_SINGLE_STEP_MAX_HW = 4096   # one reduction step when HW fits one tile
_MXU_MAX_HW = 512            # route the row-sum through the MXU below this
_MULTI_STEP_THW = 2048       # reduction tile width for large feature maps
_TARGET_BLOCK_BYTES = 8 * 1024 * 1024
_MAX_TR = 8192


def _round_up(x, m):
    return (x + m - 1) // m * m


def _int_pow(x, n):
    """x ** n for a small positive Python int using plain VPU multiplies."""
    acc = None
    base = x
    while n > 0:
        if n & 1:
            acc = base if acc is None else acc * base
        n >>= 1
        if n:
            base = base * base
    return acc


def _pow_p(x, p):
    p_int = int(round(p))
    if float(p) == float(p_int) and 0 < p_int <= 16:
        return _int_pow(x, p_int)          # VPU multiplies, no EUP exp/log
    return jnp.power(x, jnp.float32(p))    # non-integer p: EUP path (correct, slower)


def _gem_kernel_single(x_ref, o_ref, *, p, eps, inv_hw, hw, use_mxu, mask_tail):
    # x_ref: (TR, THW) block; o_ref: (TR, 1). Single reduction step: no scratch.
    x = jnp.maximum(x_ref[...].astype(jnp.float32), jnp.float32(eps))
    xp = _pow_p(x, p)
    if mask_tail:
        # Block lane width > HW: zero the garbage tail columns. Use a select
        # (not multiply-by-mask) so stale NaN/inf in the padded lanes is safe.
        col = lax.broadcasted_iota(jnp.int32, xp.shape, 1)
        xp = jnp.where(col < hw, xp, 0.0)
    if use_mxu:
        # Row-sum on the (otherwise idle) MXU: xp @ ones -> (TR, 128), every
        # column holds the row sum; keeps the 2 XLU ports out of the hot loop.
        ones = jnp.ones((xp.shape[1], _LANE), jnp.float32)
        s = jnp.dot(xp, ones, preferred_element_type=jnp.float32)
        row_sum = s[:, :1]
    else:
        row_sum = jnp.sum(xp, axis=-1, keepdims=True)
    mean_p = row_sum * jnp.float32(inv_hw)
    # Final 1/p root only touches TR values -> negligible EUP work.
    o_ref[...] = jnp.power(mean_p, jnp.float32(1.0 / p)).astype(o_ref.dtype)


def _gem_kernel_multi(x_ref, o_ref, acc_ref, *, p, eps, inv_hw, hw, thw,
                      hw_is_padded):
    # x_ref: (TR, THW) block; o_ref: (TR, 1); acc_ref: (TR, 1) f32 scratch.
    k = pl.program_id(1)
    last = pl.num_programs(1) - 1

    @pl.when(k == 0)
    def _init():
        acc_ref[...] = jnp.zeros_like(acc_ref)

    x = jnp.maximum(x_ref[...].astype(jnp.float32), jnp.float32(eps))
    xp = _pow_p(x, p)

    if hw_is_padded:
        # Only the last reduction tile has garbage tail columns; gate the mask
        # there so bulk steps keep the minimal per-element VPU work.
        @pl.when(k != last)
        def _bulk():
            acc_ref[...] += jnp.sum(xp, axis=-1, keepdims=True)

        @pl.when(k == last)
        def _tail():
            col = k * thw + lax.broadcasted_iota(jnp.int32, xp.shape, 1)
            masked = jnp.where(col < hw, xp, 0.0)   # select: NaN/inf-safe
            acc_ref[...] += jnp.sum(masked, axis=-1, keepdims=True)
    else:
        acc_ref[...] += jnp.sum(xp, axis=-1, keepdims=True)

    @pl.when(k == last)
    def _finalize():
        mean_p = acc_ref[...] * jnp.float32(inv_hw)
        o_ref[...] = jnp.power(mean_p, jnp.float32(1.0 / p)).astype(o_ref.dtype)


def gem_pallas(x, p=3.0, eps=1e-6):
    """GeM pooling. x: (N, C, H, W) -> (N, C, 1, 1).

    p, eps are the frozen (freeze_p=True) scalars from the PyTorch module and
    are compile-time constants here.
    """
    # TODO(synk): if p ever becomes learnable (freeze_p=False), pass it as a
    # runtime SMEM scalar input instead of baking it in at trace time.
    N, C, H, W = x.shape
    R, HW = N * C, H * W
    xf = x.reshape(R, HW)
    itemsize = jnp.dtype(x.dtype).itemsize

    single_step = HW <= _SINGLE_STEP_MAX_HW
    if single_step:
        use_mxu = HW <= _MXU_MAX_HW
        # MXU path: lane-pad the block width to 128 (partial block + select
        # mask). jnp.sum path: block width == HW exactly (full array dim).
        thw = _round_up(HW, _LANE) if use_mxu else HW
    else:
        use_mxu = False
        thw = _MULTI_STEP_THW

    # Row (parallel) tile: target ~8 MiB lane-padded input blocks so the
    # ~0.35us per-step overhead is small vs the DMA, capped so the
    # double-buffered pipeline (+ lane-padded (tr,1) buffers) stays well under
    # v7x's 64 MiB physical VMEM.
    lanes = _round_up(thw, _LANE)
    tr = (_TARGET_BLOCK_BYTES // (lanes * itemsize)) // _SUBLANE * _SUBLANE
    tr = max(_SUBLANE, min(tr, _MAX_TR))
    if tr >= R:
        if R >= 2 * _SUBLANE:
            tr = _round_up(pl.cdiv(R, 2), _SUBLANE)   # >=2 row tiles: v7x megacore
        else:
            tr = _round_up(R, _SUBLANE)
    grid_r = pl.cdiv(R, tr)

    # Explicit scoped-VMEM budget: double-buffered in/out (lane-padded) +
    # accumulator + margin. Above v5e's 16 MiB / v6e's 32 MiB scoped defaults,
    # comfortably below v7x's 64 MiB physical VMEM.
    in_bytes = tr * lanes * itemsize
    out_bytes = tr * _LANE * itemsize
    acc_bytes = 0 if single_step else tr * _LANE * 4
    vmem_est = 2 * in_bytes + 2 * out_bytes + acc_bytes + (4 << 20)
    vmem_limit = int(min(48 << 20, max(32 << 20, vmem_est)))

    out_shape = jax.ShapeDtypeStruct((R, 1), x.dtype)

    if single_step:
        kernel = functools.partial(
            _gem_kernel_single, p=float(p), eps=float(eps),
            inv_hw=1.0 / float(HW), hw=HW,
            use_mxu=use_mxu, mask_tail=(thw != HW))
        out_flat = pl.pallas_call(
            kernel,
            out_shape=out_shape,
            grid=(grid_r,),
            in_specs=[pl.BlockSpec((tr, thw), lambda i: (i, 0))],
            out_specs=pl.BlockSpec((tr, 1), lambda i: (i, 0)),
            compiler_params=pltpu.CompilerParams(
                dimension_semantics=("parallel",),
                vmem_limit_bytes=vmem_limit),
        )(xf)
    else:
        grid_k = pl.cdiv(HW, thw)
        kernel = functools.partial(
            _gem_kernel_multi, p=float(p), eps=float(eps),
            inv_hw=1.0 / float(HW), hw=HW, thw=thw,
            hw_is_padded=(HW % thw != 0))
        out_flat = pl.pallas_call(
            kernel,
            out_shape=out_shape,
            grid=(grid_r, grid_k),
            in_specs=[pl.BlockSpec((tr, thw), lambda i, k: (i, k))],
            out_specs=pl.BlockSpec((tr, 1), lambda i, k: (i, 0)),
            scratch_shapes=[pltpu.VMEM((tr, 1), jnp.float32)],
            compiler_params=pltpu.CompilerParams(
                dimension_semantics=("parallel", "arbitrary"),
                vmem_limit_bytes=vmem_limit),
        )(xf)

    return out_flat.reshape(N, C, 1, 1)


def gem_ref(x, p=3.0, eps=1e-6):
    # Pure-JAX reference mirroring the PyTorch forward.
    xc = jnp.maximum(x.astype(jnp.float32), jnp.float32(eps))
    pooled = jnp.mean(jnp.power(xc, p), axis=(-2, -1), keepdims=True)
    return jnp.power(pooled, 1.0 / p).astype(x.dtype)


if __name__ == "__main__":
    # GeM(p=3.0, eps=1e-6, freeze_p=True): frozen scalar p, no learnable
    # parameters -> deterministic in-script init.
    p, eps = 3.0, 1e-6
    key = jax.random.PRNGKey(0)

    test_shapes = [
        (2, 4, 16, 16),   # single-step, MXU row-sum, lane-aligned HW
        (2, 4, 7, 7),     # single-step, MXU row-sum, masked HW tail (classic GeM)
        (1, 2, 80, 64),   # multi-step accumulator, padded last HW tile
    ]
    for i, shape in enumerate(test_shapes):
        x = jax.random.uniform(jax.random.fold_in(key, i), shape, dtype=jnp.float32)
        out = jax.block_until_ready(gem_pallas(x, p=p, eps=eps))
        ref = gem_ref(x, p=p, eps=eps)
        assert out.shape == shape[:2] + (1, 1), (shape, out.shape)
        # rtol covers MXU rounding of the f32 row-sum products.
        assert jnp.allclose(out, ref, atol=1e-5, rtol=1e-3), f"mismatch for {shape}"

    print("KERNEL_OK")
</pallas_src>

<mosaic_0001>
module attributes {stable_mosaic.version = 11 : i64} {
  func.func @_gem_kernel_single(%arg0: i32, %arg1: memref<8x256xf32, #tpu.memory_space<vmem>>, %arg2: memref<8x1xf32, #tpu.memory_space<vmem>>) attributes {dimension_semantics = [#tpu.dimension_semantics<parallel>], iteration_bounds = array<i64: 1>, scalar_prefetch = 0 : i64, scratch_operands = 0 : i64, tpu.core_type = #tpu.core_type<tc>, window_params = [{transform_indices = @transform_0, window_bounds = array<i64: 8, 256>}, {transform_indices = @transform_1, window_bounds = array<i64: 8, 1>}]} {
    %c0 = arith.constant 0 : index
    %c0_0 = arith.constant 0 : index
    %0 = vector.load %arg1[%c0, %c0_0] : memref<8x256xf32, #tpu.memory_space<vmem>>, vector<8x256xf32>
    %cst = arith.constant 9.99999997E-7 : f32
    %1 = vector.broadcast %cst : f32 to vector<8x256xf32>
    %2 = arith.maximumf %0, %1 : vector<8x256xf32>
    %3 = arith.mulf %2, %2 : vector<8x256xf32>
    %4 = arith.mulf %2, %3 : vector<8x256xf32>
    %cst_1 = arith.constant 1.000000e+00 : f32
    %5 = vector.broadcast %cst_1 : f32 to vector<256x128xf32>
    %cst_2 = arith.constant dense<0.000000e+00> : vector<8x128xf32>
    %6 = tpu.matmul %4, %5, %cst_2 {dimension_numbers = #tpu.dot_dimension_numbers<[1], [0], [0], [1], [0, 0, 1, 1], [], []>} : vector<8x256xf32>, vector<256x128xf32>, vector<8x128xf32> -> vector<8x128xf32>
    %7 = vector.extract_strided_slice %6 {offsets = [0, 0], sizes = [8, 1], strides = [1, 1]} : vector<8x128xf32> to vector<8x1xf32>
    %cst_3 = arith.constant 3.906250e-03 : f32
    %8 = vector.broadcast %cst_3 : f32 to vector<8x1xf32>
    %9 = arith.mulf %7, %8 : vector<8x1xf32>
    %cst_4 = arith.constant 0.333333343 : f32
    %10 = vector.broadcast %cst_4 : f32 to vector<8x1xf32>
    %11 = math.powf %9, %10 : vector<8x1xf32>
    %c0_5 = arith.constant 0 : index
    %c0_6 = arith.constant 0 : index
    %12 = vector.load %arg2[%c0_5, %c0_6] : memref<8x1xf32, #tpu.memory_space<vmem>>, vector<8x1xf32>
    tpu.vector_store %arg2[%c0_5, %c0_6], %11 {strides = array<i32>} : memref<8x1xf32, #tpu.memory_space<vmem>>, vector<8x1xf32>,
    return
  }
  func.func @transform_0(%arg0: i32) -> (i32, i32) {
    %c0_i32 = arith.constant 0 : i32
    %c0_i32_0 = arith.constant 0 : i32
    return %arg0, %c0_i32 : i32, i32
  }
  func.func @transform_1(%arg0: i32) -> (i32, i32) {
    %c0_i32 = arith.constant 0 : i32
    %c0_i32_0 = arith.constant 0 : i32
    return %arg0, %c0_i32 : i32, i32
  }
}

</mosaic_0001>

<llo_original>
// kernel: tpu_custom_call.1
$region0: #{tpu_custom_call.1}
  #allocation0 [shape = 'u32[]', space=smem, size = 0x4, offset = 0x4, fixed_abs, tag = 'smem constant byte address 0x4 - core index']
  #allocation1 [shape = 'u32[144,128]{1,0:T(1,128)}', space=vmem, size = 0x12000, scoped, tag = 'internal scratch']
  %s0 = inlined_call_operand.hbm [shape: f32[8,256], index: 0, kind: input, shape index: {}]
  %s1 = inlined_call_operand.vmem [shape: f32[8,1], index: 1, kind: output, shape index: {}]
  %s2 = sld [smem:[#allocation0]]
  $region18: #{tpu_custom_call.1} parent=0
    _
  %s4 = ssub.s32 1, %s2
  %s5 = scalar_select 0, %s4, %s2
  $region1: #{tpu_custom_call.1} parent=0
    #allocation2 [shape = 'u8[8192]{0}', space=vmem, size = 0x2000, scoped, tag = 'input window, operand 0, single buffered']
    #allocation3 [shape = 's32[1]{0}', space=sflag, size = 0x4, scoped, tag = 'scoped memory for tpu_custom_call.1']
    %6 = vsyncpa [#allocation3], 0
    // Predicated region
    $region2: #{tpu_custom_call.1} parent=1 // pred_check
      _
    $region3: #{tpu_custom_call.1} parent=1 // pred_check_branch
      %8 = sbr.rel (0) target = $region5
    $region4: #{tpu_custom_call.1} parent=1 // pred_region
      %s10 = ssub.s32 256, 256
      %11 = vsyncadd [#allocation3], %s10
      %s13 = sshll.u32 [#allocation2], 4
      %s14 = int_to_ptr.vmem [resolvable:$true] %s13
      %16 = dma.hbm_to_vmem [thread:$0]  %s0, 256, %s14, [#allocation3]
    $region5: #{tpu_custom_call.1} parent=1 // pred_fallthru
      _
    // Predicated region
    $region6: #{tpu_custom_call.1} parent=1 // pred_check
      _
    $region7: #{tpu_custom_call.1} parent=1 // pred_check_branch
      %18 = sbr.rel (0) target = $region9
    $region8: #{tpu_custom_call.1} parent=1 // pred_region
      %19 = dma.done [#allocation3], 256
    $region9: #{tpu_custom_call.1} parent=1 // pred_fallthru
      _
    %v20 = vld [vmem:[#allocation2] sm:$0xff]
    %v21 = vld [vmem:[#allocation2 + $0x8] sm:$0xff]
    %v22 = vmax.f32 %v20, 1e-06
    %v23 = vmax.f32 %v21, 1e-06
    %v24 = vmul.f32 %v22, %v22
    %v25 = vmul.f32 %v23, %v23
    %v26 = vmul.f32 %v22, %v24
    %v27 = vmul.f32 %v23, %v25
    %28 = vmatprep.subr.mxu0 0.0
    %29 = vmatpush1.msra.mxu0 1.0
    %30 = vmatprep.subr.mxu0 0.0
    %31 = vmatpush1.msra.mxu0 1.0
    %32 = vmatprep.subr.mxu0 0.0
    %33 = vmatpush1.msra.mxu0 1.0
    %34 = vmatprep.subr.mxu0 0.0
    %35 = vmatpush1.msra.mxu0 1.0
    %36 = vmatprep.subr.mxu0 0.0
    %37 = vmatpush1.msra.mxu0 1.0
    %38 = vmatprep.subr.mxu0 0.0
    %39 = vmatpush1.msra.mxu0 1.0
    %40 = vmatprep.subr.mxu0 0.0
    %41 = vmatpush1.msra.mxu0 1.0
    %42 = vmatprep.subr.mxu0 0.0
    %43 = vmatpush1.msra.mxu0 1.0
    %44 = vmatprep.subr.mxu0 0.0
    %45 = vmatpush1.msra.mxu0 1.0
    %46 = vmatprep.subr.mxu0 0.0
    %47 = vmatpush1.msra.mxu0 1.0
    %48 = vmatprep.subr.mxu0 0.0
    %49 = vmatpush1.msra.mxu0 1.0
    %50 = vmatprep.subr.mxu0 0.0
    %51 = vmatpush1.msra.mxu0 1.0
    %52 = vmatprep.subr.mxu0 0.0
    %53 = vmatpush1.msra.mxu0 1.0
    %54 = vmatprep.subr.mxu0 0.0
    %55 = vmatpush1.msra.mxu0 1.0
    %56 = vmatprep.subr.mxu0 0.0
    %57 = vmatpush1.msra.mxu0 1.0
    %58 = vmatprep.subr.mxu0 0.0
    %59 = vmatpush1.msra.mxu0 1.0
    %60 = vmatprep.subr.mxu0 0.0
    %61 = vmatpush1.msra.mxu0 1.0
    %62 = vmatprep.subr.mxu0 0.0
    %63 = vmatpush1.msra.mxu0 1.0
    %64 = vmatprep.subr.mxu0 0.0
    %65 = vmatpush1.msra.mxu0 1.0
    %66 = vmatprep.subr.mxu0 0.0
    %67 = vmatpush1.msra.mxu0 1.0
    %68 = vmatprep.subr.mxu0 0.0
    %69 = vmatpush1.msra.mxu0 1.0
    %70 = vmatprep.subr.mxu0 0.0
    %71 = vmatpush1.msra.mxu0 1.0
    %72 = vmatprep.subr.mxu0 0.0
    %73 = vmatpush1.msra.mxu0 1.0
    %74 = vmatprep.subr.mxu0 0.0
    %75 = vmatpush1.msra.mxu0 1.0
    %76 = vmatprep.subr.mxu0 0.0
    %77 = vmatpush1.msra.mxu0 1.0
    %78 = vmatprep.subr.mxu0 0.0
    %79 = vmatpush1.msra.mxu0 1.0
    %80 = vmatprep.subr.mxu0 0.0
    %81 = vmatpush1.msra.mxu0 1.0
    %82 = vmatprep.subr.mxu0 0.0
    %83 = vmatpush1.msra.mxu0 1.0
    %84 = vmatprep.subr.mxu0 0.0
    %85 = vmatpush1.msra.mxu0 1.0
    %86 = vmatprep.subr.mxu0 0.0
    %87 = vmatpush1.msra.mxu0 1.0
    %88 = vmatprep.subr.mxu0 0.0
    %89 = vmatpush1.msra.mxu0 1.0
    %90 = vmatprep.subr.mxu0 0.0
    %91 = vmatpush1.msra.mxu0 1.0
    %92 = vmatprep.mubr.f32.mxu0 %v27
    %93 = vmatmul.mubr.f32.gmra.mrb[0].mxu0 %v26
    %v94 = vpop.f32.mrb[0].mxu0
    %v95 = vadd.f32 0.0, %v94
    %v96 = vpop.f32.mrb[0].mxu0
    %97 = vdwg.mxu0
    %v98 = vmul.f32 %v95, 0.00390625
    %v99 = vpow.f32 %v98, 0.33333334
    %vm100 = vcmask 7168
    %101 = vst.msk [vmem:[%s1] sm:$0xff] %vm100, %v99
    // Predicated region
    $region10: #{tpu_custom_call.1} parent=1 // pred_check
      _
    $region11: #{tpu_custom_call.1} parent=1 // pred_check_branch
      %103 = sbr.rel (0) target = $region13
    $region12: #{tpu_custom_call.1} parent=1 // pred_region
      _
    $region13: #{tpu_custom_call.1} parent=1 // pred_fallthru
      _
    // Predicated region
    $region14: #{tpu_custom_call.1} parent=1 // pred_check
      _
    $region15: #{tpu_custom_call.1} parent=1 // pred_check_branch
      %105 = sbr.rel (0) target = $region17
    $region16: #{tpu_custom_call.1} parent=1 // pred_region
      _
    $region17: #{tpu_custom_call.1} parent=1 // pred_fallthru
      _
    %106 = vsyncpa [#allocation3], 1

</llo_original>
